<compile_context>
chip_gen: v6e
topology: v6e:2x2x1
jax: 0.10.0
libtpu: 0.0.40
codegen_flags: <defaults>
</compile_context>

<pallas_src>
import functools
import math

import jax
import jax.numpy as jnp
from jax import lax
from jax.experimental import pallas as pl
from jax.experimental.pallas import tpu as pltpu


def _arc_margin_kernel(x_ref, w_ref, label_ref, out_ref, *,
                       cos_m, sin_m, th, mm, scale, easy_margin, tile_n):
    j = pl.program_id(0)                          # class-tile index

    x = x_ref[...].astype(jnp.float32)            # (Bp, Din)
    w = w_ref[...].astype(jnp.float32)            # (TILE_N, Din)
    label = label_ref[...]                        # (Bp, 1) int32

    # F.normalize(v, dim=1) == v * rsqrt(max(sum(v*v), eps^2)), eps = 1e-12.
    # rsqrt goes to the EUP (its own VLIW slot); multiply replaces the divide.
    x_n = x * lax.rsqrt(jnp.maximum(jnp.sum(x * x, axis=1, keepdims=True), 1e-24))
    w_n = w * lax.rsqrt(jnp.maximum(jnp.sum(w * w, axis=1, keepdims=True), 1e-24))

    # cosine = x_n @ w_n^T as a (1,1)-contraction: feeds the MXU from W's
    # natural row-major layout (no transposed VMEM copy). bf16 in, f32 acc.
    cosine = lax.dot_general(
        x_n.astype(jnp.bfloat16), w_n.astype(jnp.bfloat16),
        dimension_numbers=(((1,), (1,)), ((), ())),
        preferred_element_type=jnp.float32)       # (Bp, TILE_N)

    sine = jnp.sqrt(jnp.clip(1.0 - cosine * cosine, 0.0, 1.0))
    phi = cosine * cos_m - sine * sin_m
    if easy_margin:
        phi = jnp.where(cosine > 0.0, phi, cosine)
    else:
        phi = jnp.where(cosine > th, phi, cosine - mm)

    # one-hot(label) restricted to this class tile: GLOBAL column index.
    col = j * tile_n + lax.broadcasted_iota(jnp.int32, cosine.shape, 1)
    is_target = col == label                      # (Bp,1) broadcasts to (Bp,TILE_N)

    out_ref[...] = (jnp.where(is_target, phi, cosine) * scale).astype(out_ref.dtype)


def arc_margin_forward(x, weight, label, *, scale=30.0, margin=0.3,
                       easy_margin=False, tile_n=None):
    """ArcMarginProduct.forward(input, label) -> (B, out_features) float32.

    For production-sized heads, store `weight` in bfloat16: the kernel accepts
    any float dtype and a bf16 weight halves the HBM->VMEM streaming bytes
    (the kernel's binding resource at large out_features).
    """
    B, din = x.shape
    dout, din_w = weight.shape
    assert din == din_w

    # --- tile sizing --------------------------------------------------------
    b_pad = -(-B // 8) * 8                        # sublane multiple
    dout_128 = -(-dout // 128) * 128              # lane-dense minimum
    if tile_n is None:
        # Double-buffered weight tile <= ~16 MiB -> safe within scoped VMEM on
        # v7x (64 MiB physical) and v5e/v6e; cap at 2048 classes per tile.
        budget = 16 * 1024 * 1024
        t = (budget // (2 * din * weight.dtype.itemsize)) // 128 * 128
        tile_n = int(min(max(t, 128), 2048, dout_128))
    else:
        assert tile_n % 128 == 0
        tile_n = int(min(tile_n, dout_128))
    dout_pad = -(-dout // tile_n) * tile_n
    grid_n = dout_pad // tile_n

    # --- pad operands (padded rows/cols are sliced off at the end) ----------
    if b_pad != B:
        x = jnp.pad(x, ((0, b_pad - B), (0, 0)))
    if dout_pad != dout:
        weight = jnp.pad(weight, ((0, dout_pad - dout), (0, 0)))
    label2d = jnp.full((b_pad, 1), -1, dtype=jnp.int32)
    label2d = label2d.at[:B, 0].set(label.astype(jnp.int32))

    kernel = functools.partial(
        _arc_margin_kernel,
        cos_m=math.cos(margin), sin_m=math.sin(margin),
        th=math.cos(math.pi - margin), mm=math.sin(math.pi - margin) * margin,
        scale=scale, easy_margin=easy_margin, tile_n=tile_n)

    out = pl.pallas_call(
        kernel,
        out_shape=jax.ShapeDtypeStruct((b_pad, dout_pad), jnp.float32),
        grid=(grid_n,),
        in_specs=[
            pl.BlockSpec((b_pad, din), lambda j: (0, 0)),    # x: resident
            pl.BlockSpec((tile_n, din), lambda j: (j, 0)),   # W: streamed tile
            pl.BlockSpec((b_pad, 1), lambda j: (0, 0)),      # labels: resident
        ],
        out_specs=pl.BlockSpec((b_pad, tile_n), lambda j: (0, j)),
        compiler_params=pltpu.CompilerParams(
            dimension_semantics=("parallel",),   # v7x: 2 TCs split class tiles
            vmem_limit_bytes=48 * 1024 * 1024),  # above default scoped limits
    )(x, weight, label2d)

    return out[:B, :dout]


def arc_margin_reference(x, weight, label, *, scale=30.0, margin=0.3,
                         easy_margin=False, mxu_dtype=None):
    """Pure-JAX reference mirroring the PyTorch forward (for verification)."""
    x_n = x / jnp.maximum(jnp.linalg.norm(x, axis=1, keepdims=True), 1e-12)
    w_n = weight / jnp.maximum(jnp.linalg.norm(weight, axis=1, keepdims=True), 1e-12)
    if mxu_dtype is not None:                    # mirror the kernel's MXU dtype
        x_n = x_n.astype(mxu_dtype)
        w_n = w_n.astype(mxu_dtype)
    cosine = jnp.dot(x_n, w_n.T,
                     preferred_element_type=jnp.float32).astype(jnp.float32)
    sine = jnp.sqrt(jnp.clip(1.0 - cosine ** 2, 0.0, 1.0))
    phi = cosine * math.cos(margin) - sine * math.sin(margin)
    if easy_margin:
        phi = jnp.where(cosine > 0.0, phi, cosine)
    else:
        phi = jnp.where(cosine > math.cos(math.pi - margin),
                        phi, cosine - math.sin(math.pi - margin) * margin)
    one_hot = jax.nn.one_hot(label, weight.shape[0], dtype=cosine.dtype)
    return (one_hot * phi + (1.0 - one_hot) * cosine) * scale


if __name__ == "__main__":
    # Small deterministic setup consistent with the module:
    #   batch=8, in_features=32, out_features=64
    B, IN_FEATURES, OUT_FEATURES = 8, 32, 64

    key = jax.random.PRNGKey(0)
    kx, kw, kl = jax.random.split(key, 3)

    x = jax.random.normal(kx, (B, IN_FEATURES), dtype=jnp.float32)

    # nn.init.xavier_uniform_ on a (out_features, in_features) weight
    bound = math.sqrt(6.0 / (IN_FEATURES + OUT_FEATURES))
    weight = jax.random.uniform(kw, (OUT_FEATURES, IN_FEATURES),
                                dtype=jnp.float32, minval=-bound, maxval=bound)

    label = jax.random.randint(kl, (B,), 0, OUT_FEATURES, dtype=jnp.int32)

    out = arc_margin_forward(x, weight, label, scale=30.0, margin=0.3,
                             easy_margin=False)
    out = jax.block_until_ready(out)
    assert out.shape == (B, OUT_FEATURES)

    # Tight check against a reference that mirrors the kernel's bf16 MXU path.
    ref_bf16 = arc_margin_reference(x, weight, label, scale=30.0, margin=0.3,
                                    easy_margin=False, mxu_dtype=jnp.bfloat16)
    assert jnp.allclose(out, ref_bf16, atol=2e-2, rtol=1e-3)

    # Looser check against the full-f32 PyTorch-semantics reference
    # (bf16 matmul operands => ~1e-3 error in cosine, x30 after scaling).
    ref_f32 = arc_margin_reference(x, weight, label, scale=30.0, margin=0.3,
                                   easy_margin=False, mxu_dtype=None)
    assert jnp.allclose(out, ref_f32, atol=1.5e-1, rtol=1e-2)

    print("KERNEL_OK")
</pallas_src>

<mosaic_0001>
module attributes {stable_mosaic.version = 11 : i64} {
  func.func @_arc_margin_kernel(%arg0: i32, %arg1: memref<8x32xf32, #tpu.memory_space<vmem>>, %arg2: memref<128x32xf32, #tpu.memory_space<vmem>>, %arg3: memref<8x1xi32, #tpu.memory_space<vmem>>, %arg4: memref<8x128xf32, #tpu.memory_space<vmem>>) attributes {dimension_semantics = [#tpu.dimension_semantics<parallel>], iteration_bounds = array<i64: 1>, scalar_prefetch = 0 : i64, scratch_operands = 0 : i64, tpu.core_type = #tpu.core_type<tc>, window_params = [{pipeline_mode = #tpu.pipeline_mode<synchronous>, transform_indices = @transform_0, window_bounds = array<i64: 8, 32>}, {transform_indices = @transform_1, window_bounds = array<i64: 128, 32>}, {pipeline_mode = #tpu.pipeline_mode<synchronous>, transform_indices = @transform_2, window_bounds = array<i64: 8, 1>}, {transform_indices = @transform_3, window_bounds = array<i64: 8, 128>}]} {
    %c0 = arith.constant 0 : index
    %c0_0 = arith.constant 0 : index
    %0 = vector.load %arg1[%c0, %c0_0] : memref<8x32xf32, #tpu.memory_space<vmem>>, vector<8x32xf32>
    %c0_1 = arith.constant 0 : index
    %c0_2 = arith.constant 0 : index
    %1 = vector.load %arg2[%c0_1, %c0_2] : memref<128x32xf32, #tpu.memory_space<vmem>>, vector<128x32xf32>
    %c0_3 = arith.constant 0 : index
    %c0_4 = arith.constant 0 : index
    %2 = vector.load %arg3[%c0_3, %c0_4] : memref<8x1xi32, #tpu.memory_space<vmem>>, vector<8x1xi32>
    %3 = arith.mulf %0, %0 : vector<8x32xf32>
    %cst = arith.constant dense<0.000000e+00> : vector<8xf32>
    %4 = vector.multi_reduction <add>, %3, %cst [1] : vector<8x32xf32> to vector<8xf32>
    %5 = vector.shape_cast %4 : vector<8xf32> to vector<8x1xf32>
    %cst_5 = arith.constant 1.000000e-24 : f32
    %6 = vector.broadcast %cst_5 : f32 to vector<8x1xf32>
    %7 = arith.maximumf %5, %6 : vector<8x1xf32>
    %8 = math.rsqrt %7 : vector<8x1xf32>
    %9 = vector.broadcast %8 : vector<8x1xf32> to vector<8x32xf32>
    %10 = arith.mulf %0, %9 : vector<8x32xf32>
    %11 = arith.mulf %1, %1 : vector<128x32xf32>
    %cst_6 = arith.constant dense<0.000000e+00> : vector<128xf32>
    %12 = vector.multi_reduction <add>, %11, %cst_6 [1] : vector<128x32xf32> to vector<128xf32>
    %13 = vector.shape_cast %12 : vector<128xf32> to vector<128x1xf32>
    %cst_7 = arith.constant 1.000000e-24 : f32
    %14 = vector.broadcast %cst_7 : f32 to vector<128x1xf32>
    %15 = arith.maximumf %13, %14 : vector<128x1xf32>
    %16 = math.rsqrt %15 : vector<128x1xf32>
    %17 = vector.broadcast %16 : vector<128x1xf32> to vector<128x32xf32>
    %18 = arith.mulf %1, %17 : vector<128x32xf32>
    %19 = arith.truncf %10 : vector<8x32xf32> to vector<8x32xbf16>
    %20 = arith.truncf %18 : vector<128x32xf32> to vector<128x32xbf16>
    %cst_8 = arith.constant dense<0.000000e+00> : vector<8x128xf32>
    %21 = tpu.matmul %19, %20, %cst_8 {dimension_numbers = #tpu.dot_dimension_numbers<[1], [1], [0], [0], [0, 0, 1, 0], [], []>} : vector<8x32xbf16>, vector<128x32xbf16>, vector<8x128xf32> -> vector<8x128xf32>
    %22 = arith.mulf %21, %21 : vector<8x128xf32>
    %cst_9 = arith.constant 1.000000e+00 : f32
    %23 = vector.broadcast %cst_9 : f32 to vector<8x128xf32>
    %24 = arith.subf %23, %22 : vector<8x128xf32>
    %cst_10 = arith.constant 0.000000e+00 : f32
    %cst_11 = arith.constant 1.000000e+00 : f32
    %25 = vector.broadcast %cst_10 : f32 to vector<8x128xf32>
    %26 = arith.maximumf %25, %24 : vector<8x128xf32>
    %27 = vector.broadcast %cst_11 : f32 to vector<8x128xf32>
    %28 = arith.minimumf %27, %26 : vector<8x128xf32>
    %29 = math.sqrt %28 : vector<8x128xf32>
    %cst_12 = arith.constant 0.955336511 : f32
    %30 = vector.broadcast %cst_12 : f32 to vector<8x128xf32>
    %31 = arith.mulf %21, %30 : vector<8x128xf32>
    %cst_13 = arith.constant 0.295520216 : f32
    %32 = vector.broadcast %cst_13 : f32 to vector<8x128xf32>
    %33 = arith.mulf %29, %32 : vector<8x128xf32>
    %34 = arith.subf %31, %33 : vector<8x128xf32>
    %cst_14 = arith.constant -0.955336511 : f32
    %35 = vector.broadcast %cst_14 : f32 to vector<8x128xf32>
    %36 = arith.cmpf ogt, %21, %35 : vector<8x128xf32>
    %cst_15 = arith.constant 0.0886560603 : f32
    %37 = vector.broadcast %cst_15 : f32 to vector<8x128xf32>
    %38 = arith.subf %21, %37 : vector<8x128xf32>
    %39 = arith.select %36, %34, %38 : vector<8x128xi1>, vector<8x128xf32>
    %c128_i32 = arith.constant 128 : i32
    %40 = arith.muli %arg0, %c128_i32 : i32
    %41 = tpu.iota {dimensions = array<i32: 1>} : vector<8x128xi32>
    %42 = vector.broadcast %40 : i32 to vector<8x128xi32>
    %43 = arith.addi %42, %41 : vector<8x128xi32>
    %44 = vector.broadcast %2 : vector<8x1xi32> to vector<8x128xi32>
    %45 = arith.cmpi eq, %43, %44 : vector<8x128xi32>
    %46 = arith.select %45, %39, %21 : vector<8x128xi1>, vector<8x128xf32>
    %cst_16 = arith.constant 3.000000e+01 : f32
    %47 = vector.broadcast %cst_16 : f32 to vector<8x128xf32>
    %48 = arith.mulf %46, %47 : vector<8x128xf32>
    %c0_17 = arith.constant 0 : index
    %c0_18 = arith.constant 0 : index
    %49 = vector.load %arg4[%c0_17, %c0_18] : memref<8x128xf32, #tpu.memory_space<vmem>>, vector<8x128xf32>
    tpu.vector_store %arg4[%c0_17, %c0_18], %48 {strides = array<i32>} : memref<8x128xf32, #tpu.memory_space<vmem>>, vector<8x128xf32>,
    return
  }
  func.func @transform_0(%arg0: i32) -> (i32, i32) {
    %c0_i32 = arith.constant 0 : i32
    %c0_i32_0 = arith.constant 0 : i32
    %c0_i32_1 = arith.constant 0 : i32
    return %c0_i32, %c0_i32_0 : i32, i32
  }
  func.func @transform_1(%arg0: i32) -> (i32, i32) {
    %c0_i32 = arith.constant 0 : i32
    %c0_i32_0 = arith.constant 0 : i32
    return %arg0, %c0_i32 : i32, i32
  }
  func.func @transform_2(%arg0: i32) -> (i32, i32) {
    %c0_i32 = arith.constant 0 : i32
    %c0_i32_0 = arith.constant 0 : i32
    %c0_i32_1 = arith.constant 0 : i32
    return %c0_i32, %c0_i32_0 : i32, i32
  }
  func.func @transform_3(%arg0: i32) -> (i32, i32) {
    %c0_i32 = arith.constant 0 : i32
    %c0_i32_0 = arith.constant 0 : i32
    return %c0_i32, %arg0 : i32, i32
  }
}

</mosaic_0001>

<llo_original>
// kernel: tpu_custom_call.1
$region0: #{tpu_custom_call.1}
  #allocation0 [shape = 'u32[]', space=smem, size = 0x4, offset = 0x4, fixed_abs, tag = 'smem constant byte address 0x4 - core index']
  #allocation1 [shape = 'u32[144,128]{1,0:T(1,128)}', space=vmem, size = 0x12000, scoped, tag = 'internal scratch']
  %s0 = inlined_call_operand.vmem [shape: f32[8,32], index: 0, kind: input, shape index: {}]
  %s1 = inlined_call_operand.vmem [shape: f32[128,32], index: 1, kind: input, shape index: {}]
  %s2 = inlined_call_operand.vmem [shape: s32[8,1], index: 2, kind: input, shape index: {}]
  %s3 = inlined_call_operand.hbm [shape: f32[8,128], index: 3, kind: output, shape index: {}]
  %s4 = sld [smem:[#allocation0]]
  $region22: #{tpu_custom_call.1} parent=0
    _
  %s6 = ssub.s32 1, %s4
  %s7 = scalar_select 0, %s6, %s4
  $region1: #{tpu_custom_call.1} parent=0
    #allocation2 [shape = 'u8[4096]{0}', space=vmem, size = 0x1000, scoped, tag = 'output window, operand 0, single buffered']
    #allocation3 [shape = 's32[1]{0}', space=sflag, size = 0x4, scoped, tag = 'scoped memory for tpu_custom_call.1']
    %8 = vsyncpa [#allocation3], 0
    // Predicated region
    $region2: #{tpu_custom_call.1} parent=1 // pred_check
      _
    $region3: #{tpu_custom_call.1} parent=1 // pred_check_branch
      %10 = sbr.rel (0) target = $region5
    $region4: #{tpu_custom_call.1} parent=1 // pred_region
      _
    $region5: #{tpu_custom_call.1} parent=1 // pred_fallthru
      _
    // Predicated region
    $region6: #{tpu_custom_call.1} parent=1 // pred_check
      _
    $region7: #{tpu_custom_call.1} parent=1 // pred_check_branch
      %12 = sbr.rel (0) target = $region9
    $region8: #{tpu_custom_call.1} parent=1 // pred_region
      _
    $region9: #{tpu_custom_call.1} parent=1 // pred_fallthru
      _
    // Predicated region
    $region10: #{tpu_custom_call.1} parent=1 // pred_check
      _
    $region11: #{tpu_custom_call.1} parent=1 // pred_check_branch
      %14 = sbr.rel (0) target = $region13
    $region12: #{tpu_custom_call.1} parent=1 // pred_region
      _
    $region13: #{tpu_custom_call.1} parent=1 // pred_fallthru
      _
    %v16 = vld [vmem:[%s0] sm:$0xff]
    %v17 = vld [vmem:[%s1] sm:$0xff]
    %v18 = vld [vmem:[%s1 + $0x8] sm:$0xff]
    %v19 = vld [vmem:[%s1 + $0x10] sm:$0xff]
    %v20 = vld [vmem:[%s1 + $0x18] sm:$0xff]
    %v21 = vld [vmem:[%s1 + $0x20] sm:$0xff]
    %v22 = vld [vmem:[%s1 + $0x28] sm:$0xff]
    %v23 = vld [vmem:[%s1 + $0x30] sm:$0xff]
    %v24 = vld [vmem:[%s1 + $0x38] sm:$0xff]
    %v25 = vld [vmem:[%s1 + $0x40] sm:$0xff]
    %v26 = vld [vmem:[%s1 + $0x48] sm:$0xff]
    %v27 = vld [vmem:[%s1 + $0x50] sm:$0xff]
    %v28 = vld [vmem:[%s1 + $0x58] sm:$0xff]
    %v29 = vld [vmem:[%s1 + $0x60] sm:$0xff]
    %v30 = vld [vmem:[%s1 + $0x68] sm:$0xff]
    %v31 = vld [vmem:[%s1 + $0x70] sm:$0xff]
    %v32 = vld [vmem:[%s1 + $0x78] sm:$0xff]
    %v33 = vld [vmem:[%s2] sm:$0xff]
    %v34 = vmul.f32 %v16, %v16
    %vm35 = vcmask 261120
    %v36 = vsel %vm35, %v34, 0.0
    %37 = vadd.xlane.f32.xlu0 %v36
    %v38 = vpop.xlane.xlu0 %37
    %v39 = vmax.f32 %v38, 1e-24
    %v40 = vrsqrt.pop %v39
    %v41 = vmul.f32 %v16, %v40
    %v42 = vmul.f32 %v17, %v17
    %v43 = vmul.f32 %v18, %v18
    %v44 = vmul.f32 %v19, %v19
    %v45 = vmul.f32 %v20, %v20
    %v46 = vmul.f32 %v21, %v21
    %v47 = vmul.f32 %v22, %v22
    %v48 = vmul.f32 %v23, %v23
    %v49 = vmul.f32 %v24, %v24
    %v50 = vmul.f32 %v25, %v25
    %v51 = vmul.f32 %v26, %v26
    %v52 = vmul.f32 %v27, %v27
    %v53 = vmul.f32 %v28, %v28
    %v54 = vmul.f32 %v29, %v29
    %v55 = vmul.f32 %v30, %v30
    %v56 = vmul.f32 %v31, %v31
    %v57 = vmul.f32 %v32, %v32
    %v58 = vsel %vm35, %v42, 0.0
    %59 = vadd.xlane.f32.xlu0 %v58
    %v60 = vpop.xlane.xlu0 %59
    %v61 = vsel %vm35, %v43, 0.0
    %62 = vadd.xlane.f32.xlu0 %v61
    %v63 = vpop.xlane.xlu0 %62
    %v64 = vsel %vm35, %v44, 0.0
    %65 = vadd.xlane.f32.xlu0 %v64
    %v66 = vpop.xlane.xlu0 %65
    %v67 = vsel %vm35, %v45, 0.0
    %68 = vadd.xlane.f32.xlu0 %v67
    %v69 = vpop.xlane.xlu0 %68
    %v70 = vsel %vm35, %v46, 0.0
    %71 = vadd.xlane.f32.xlu0 %v70
    %v72 = vpop.xlane.xlu0 %71
    %v73 = vsel %vm35, %v47, 0.0
    %74 = vadd.xlane.f32.xlu0 %v73
    %v75 = vpop.xlane.xlu0 %74
    %v76 = vsel %vm35, %v48, 0.0
    %77 = vadd.xlane.f32.xlu0 %v76
    %v78 = vpop.xlane.xlu0 %77
    %v79 = vsel %vm35, %v49, 0.0
    %80 = vadd.xlane.f32.xlu0 %v79
    %v81 = vpop.xlane.xlu0 %80
    %v82 = vsel %vm35, %v50, 0.0
    %83 = vadd.xlane.f32.xlu0 %v82
    %v84 = vpop.xlane.xlu0 %83
    %v85 = vsel %vm35, %v51, 0.0
    %86 = vadd.xlane.f32.xlu0 %v85
    %v87 = vpop.xlane.xlu0 %86
    %v88 = vsel %vm35, %v52, 0.0
    %89 = vadd.xlane.f32.xlu0 %v88
    %v90 = vpop.xlane.xlu0 %89
    %v91 = vsel %vm35, %v53, 0.0
    %92 = vadd.xlane.f32.xlu0 %v91
    %v93 = vpop.xlane.xlu0 %92
    %v94 = vsel %vm35, %v54, 0.0
    %95 = vadd.xlane.f32.xlu0 %v94
    %v96 = vpop.xlane.xlu0 %95
    %v97 = vsel %vm35, %v55, 0.0
    %98 = vadd.xlane.f32.xlu0 %v97
    %v99 = vpop.xlane.xlu0 %98
    %v100 = vsel %vm35, %v56, 0.0
    %101 = vadd.xlane.f32.xlu0 %v100
    %v102 = vpop.xlane.xlu0 %101
    %v103 = vsel %vm35, %v57, 0.0
    %104 = vadd.xlane.f32.xlu0 %v103
    %v105 = vpop.xlane.xlu0 %104
    %v106 = vmax.f32 %v60, 1e-24
    %v107 = vmax.f32 %v63, 1e-24
    %v108 = vmax.f32 %v66, 1e-24
    %v109 = vmax.f32 %v69, 1e-24
    %v110 = vmax.f32 %v72, 1e-24
    %v111 = vmax.f32 %v75, 1e-24
    %v112 = vmax.f32 %v78, 1e-24
    %v113 = vmax.f32 %v81, 1e-24
    %v114 = vmax.f32 %v84, 1e-24
    %v115 = vmax.f32 %v87, 1e-24
    %v116 = vmax.f32 %v90, 1e-24
    %v117 = vmax.f32 %v93, 1e-24
    %v118 = vmax.f32 %v96, 1e-24
    %v119 = vmax.f32 %v99, 1e-24
    %v120 = vmax.f32 %v102, 1e-24
    %v121 = vmax.f32 %v105, 1e-24
    %v122 = vrsqrt.pop %v106
    %v123 = vrsqrt.pop %v107
    %v124 = vrsqrt.pop %v108
    %v125 = vrsqrt.pop %v109
    %v126 = vrsqrt.pop %v110
    %v127 = vrsqrt.pop %v111
    %v128 = vrsqrt.pop %v112
    %v129 = vrsqrt.pop %v113
    %v130 = vrsqrt.pop %v114
    %v131 = vrsqrt.pop %v115
    %v132 = vrsqrt.pop %v116
    %v133 = vrsqrt.pop %v117
    %v134 = vrsqrt.pop %v118
    %v135 = vrsqrt.pop %v119
    %v136 = vrsqrt.pop %v120
    %v137 = vrsqrt.pop %v121
    %v138 = vmul.f32 %v17, %v122
    %v139 = vmul.f32 %v18, %v123
    %v140 = vmul.f32 %v19, %v124
    %v141 = vmul.f32 %v20, %v125
    %v142 = vmul.f32 %v21, %v126
    %v143 = vmul.f32 %v22, %v127
    %v144 = vmul.f32 %v23, %v128
    %v145 = vmul.f32 %v24, %v129
    %v146 = vmul.f32 %v25, %v130
    %v147 = vmul.f32 %v26, %v131
    %v148 = vmul.f32 %v27, %v132
    %v149 = vmul.f32 %v28, %v133
    %v150 = vmul.f32 %v29, %v134
    %v151 = vmul.f32 %v30, %v135
    %v152 = vmul.f32 %v31, %v136
    %v153 = vmul.f32 %v32, %v137
    %v154 = vpack.c.bf16 %v41, %v41
    %v155 = vpack.c.bf16 %v139, %v138
    %v156 = vpack.c.bf16 %v141, %v140
    %v157 = vpack.c.bf16 %v143, %v142
    %v158 = vpack.c.bf16 %v145, %v144
    %v159 = vpack.c.bf16 %v147, %v146
    %v160 = vpack.c.bf16 %v149, %v148
    %v161 = vpack.c.bf16 %v151, %v150
    %v162 = vpack.c.bf16 %v153, %v152
    %v164 = vsel %vm35, %v154, 0
    %v167 = vsel %vm35, %v155, 0
    %v170 = vsel %vm35, %v156, 0
    %v173 = vsel %vm35, %v157, 0
    %v176 = vsel %vm35, %v158, 0
    %v179 = vsel %vm35, %v159, 0
    %v182 = vsel %vm35, %v160, 0
    %v185 = vsel %vm35, %v161, 0
    %v188 = vsel %vm35, %v162, 0
    %190 = vmatprep.subr.bf16.mxu0 0
    %191 = vmatpush1.bf16.xpose.msra.mxu0 %v188
    %192 = vmatprep.subr.bf16.mxu0 0
    %193 = vmatpush1.bf16.xpose.msra.mxu0 %v185
    %194 = vmatprep.subr.bf16.mxu0 0
    %195 = vmatpush1.bf16.xpose.msra.mxu0 %v182
    %196 = vmatprep.subr.bf16.mxu0 0
    %197 = vmatpush1.bf16.xpose.msra.mxu0 %v179
    %198 = vmatprep.subr.bf16.mxu0 0
    %199 = vmatpush1.bf16.xpose.msra.mxu0 %v176
    %200 = vmatprep.subr.bf16.mxu0 0
    %201 = vmatpush1.bf16.xpose.msra.mxu0 %v173
    %202 = vmatprep.subr.bf16.mxu0 0
    %203 = vmatpush1.bf16.xpose.msra.mxu0 %v170
    %204 = vmatprep.subr.bf16.mxu0 0
    %205 = vmatpush1.bf16.xpose.msra.mxu0 %v167
    %206 = vmatprep.subr.bf16.mxu0 0
    %207 = vmatpush2.bf16.xpose.msra.mxu0 0
    %208 = vmatprep.subr.bf16.mxu0 0
    %209 = vmatpush2.bf16.xpose.msra.mxu0 0
    %210 = vmatprep.subr.bf16.mxu0 0
    %211 = vmatpush2.bf16.xpose.msra.mxu0 0
    %212 = vmatprep.subr.bf16.mxu0 0
    %213 = vmatpush2.bf16.xpose.msra.mxu0 0
    %214 = vmatprep.subr.bf16.mxu0 0
    %215 = vmatpush2.bf16.xpose.msra.mxu0 0
    %216 = vmatprep.subr.bf16.mxu0 0
    %217 = vmatpush2.bf16.xpose.msra.mxu0 0
    %218 = vmatprep.subr.bf16.mxu0 0
    %219 = vmatpush2.bf16.xpose.msra.mxu0 0
    %220 = vmatprep.subr.bf16.mxu0 0
    %221 = vmatpush2.bf16.xpose.msra.mxu0 0
    %222 = vmatprep.mubr.bf16.mxu0 0
    %223 = vmatmul.mubr.bf16.gmra.mxu0 %v164
    %v224 = vpop.f32.mrf.mxu0
    %v225 = vadd.f32 0.0, %v224
    %v226 = vpop.f32.mrf.mxu0
    %v227 = vpop.f32.mrf.mxu0
    %v228 = vpop.f32.mrf.mxu0
    %229 = vdwg.mxu0
    %v230 = vmul.f32 %v225, %v225
    %v231 = vsub.f32 1.0, %v230
    %v232 = vmax.f32 %v231, 0.0
    %v233 = vmin.f32 %v232, 1.0
    %v234 = vrsqrt.pop %v233
    %v235 = vmul.f32 %v233, %v234
    %vm236 = vcmp.eq.f32.partialorder %v233, inf
    %v237 = vsel %vm236, %v233, %v235
    %vm238 = vcmp.eq.f32.partialorder %v233, 0.0
    %v239 = vand.u32 %v233, 2147483648
    %v240 = vsel %vm238, %v239, %v237
    %v241 = vmul.f32 %v225, 0.9553365
    %v242 = vmul.f32 %v240, 0.29552022
    %v243 = vsub.f32 %v241, %v242
    %vm244 = vcmp.gt.f32.partialorder %v225, -0.9553365
    %v245 = vsub.f32 %v225, 0.08865606
    %v246 = vsel %vm244, %v243, %v245
    %s247 = smul.u32 0, 128
    %v248 = vlaneseq
    %v249 = vand.u32 %v248, 127
    %v250 = vstv %s247
    %v251 = vadd.s32 %v250, %v249
    %252 = vset.pattern.permute.xlu0 0
    %253 = vperm.xlu0 %252, %v33
    %v254 = vpop.permute.xlu0 %253
    %vm255 = vcmp.eq.s32.totalorder %v251, %v254
    %v256 = vsel %vm255, %v246, %v225
    %v257 = vmul.f32 %v256, 30.0
    %258 = vst [vmem:[#allocation2] sm:$0xff] %v257
    // Predicated region
    $region14: #{tpu_custom_call.1} parent=1 // pred_check
      _
    $region15: #{tpu_custom_call.1} parent=1 // pred_check_branch
      %260 = sbr.rel (0) target = $region17
    $region16: #{tpu_custom_call.1} parent=1 // pred_region
      %s262 = ssub.s32 128, 128
      %263 = vsyncadd [#allocation3], %s262
      %s265 = sshll.u32 [#allocation2], 4
      %s266 = int_to_ptr.vmem [resolvable:$true] %s265
      %268 = dma.vmem_to_hbm [thread:$0]  %s266, 128, %s3, [#allocation3]
    $region17: #{tpu_custom_call.1} parent=1 // pred_fallthru
      _
    // Predicated region
    $region18: #{tpu_custom_call.1} parent=1 // pred_check
      _
    $region19: #{tpu_custom_call.1} parent=1 // pred_check_branch
      %270 = sbr.rel (0) target = $region21
    $region20: #{tpu_custom_call.1} parent=1 // pred_region
      %271 = dma.done [#allocation3], 128
    $region21: #{tpu_custom_call.1} parent=1 // pred_fallthru
      _
    %272 = vsyncpa [#allocation3], 1

</llo_original>
